<compile_context>
chip_gen: v6e
topology: v6e:2x2x1
jax: 0.10.0
libtpu: 0.0.40
codegen_flags: <defaults>
</compile_context>

<pallas_src>
import functools

import jax
import jax.numpy as jnp
from jax.experimental import pallas as pl
from jax.experimental.pallas import tpu as pltpu


def _transition_kernel(x_ref, scale_ref, shift_ref, w_ref, o_ref):
    # x_ref:     (C, THW)    spatial tile of one batch element (NCHW layout)
    # scale_ref: (C, 1)      folded BN scale  (gamma / sqrt(var + eps))
    # shift_ref: (C, 1)      folded BN shift  (beta - mean * scale)
    # w_ref:     (OUTC, C)   1x1 conv weight
    # o_ref:     (OUTC, THW)
    z = jnp.maximum(x_ref[...] * scale_ref[...] + shift_ref[...], 0.0)
    o_ref[...] = jnp.dot(w_ref[...], z,
                         preferred_element_type=jnp.float32).astype(o_ref.dtype)


def _pick_thw(hw, c, out_c, max_thw):
    """Spatial (lane) tile: a multiple of 128, or the full H*W, sized for VMEM."""
    if hw % 128 != 0 or hw <= 128:
        return hw                          # full-extent block is always legal
    # Keep double-buffered x + out tiles around <= ~24 MiB so the kernel also
    # fits comfortably in v7x's 64 MiB VMEM (v5e/v6e have 128 MiB).
    per_col_bytes = 4 * 2 * (c + out_c)
    cap = max(128, ((24 * 1024 * 1024) // per_col_bytes) // 128 * 128)
    return int(min(hw, max_thw, cap))


@functools.partial(jax.jit, static_argnames=("eps", "max_thw"))
def transition_forward(x_nchw, gamma, beta, conv_weight, *, eps=1e-5, max_thw=2048):
    """BN(train-mode stats) -> ReLU -> 1x1 Conv (no bias), NCHW in / NCHW out."""
    n, c, h, w = x_nchw.shape
    out_c = conv_weight.shape[0]
    hw = h * w

    x = x_nchw.reshape(n, c, hw)

    # ---- one-pass batch statistics, folded with gamma/beta into scale/shift ----
    mean = jnp.mean(x, axis=(0, 2))                                 # (C,)
    mean_sq = jnp.mean(jnp.square(x), axis=(0, 2))                  # (C,)
    var = jnp.maximum(mean_sq - jnp.square(mean), 0.0)              # biased variance
    scale = gamma / jnp.sqrt(var + eps)                             # (C,)
    shift = beta - mean * scale                                     # (C,)
    scale_col = scale.reshape(c, 1).astype(x.dtype)
    shift_col = shift.reshape(c, 1).astype(x.dtype)

    w_mat = conv_weight.reshape(out_c, c)                           # (OUTC, C)

    thw = _pick_thw(hw, c, out_c, max_thw)
    grid = (n, pl.cdiv(hw, thw))

    # Explicit scoped-VMEM limit: double-buffered x/out tiles + weight + headroom.
    vmem_need = 4 * (2 * thw * (c + out_c) + 2 * out_c * c + 4 * c)
    vmem_limit = int(min(max(2 * vmem_need, 16 * 1024 * 1024), 64 * 1024 * 1024))

    out = pl.pallas_call(
        _transition_kernel,
        out_shape=jax.ShapeDtypeStruct((n, out_c, hw), x_nchw.dtype),
        grid=grid,
        in_specs=[
            pl.BlockSpec((None, c, thw), lambda b, s: (b, 0, s)),   # x tile (batch squeezed)
            pl.BlockSpec((c, 1), lambda b, s: (0, 0)),              # scale (resident)
            pl.BlockSpec((c, 1), lambda b, s: (0, 0)),              # shift (resident)
            pl.BlockSpec((out_c, c), lambda b, s: (0, 0)),          # weight (resident)
        ],
        out_specs=pl.BlockSpec((None, out_c, thw), lambda b, s: (b, 0, s)),
        compiler_params=pltpu.CompilerParams(
            dimension_semantics=("parallel", "parallel"),           # shards across v7x's 2 TCs
            vmem_limit_bytes=vmem_limit,
        ),
    )(x, scale_col, shift_col, w_mat)

    return out.reshape(n, out_c, h, w)                              # already NCHW


def _reference(x_nchw, gamma, beta, conv_weight, eps=1e-5):
    mean = jnp.mean(x_nchw, axis=(0, 2, 3), keepdims=True)
    var = jnp.mean(jnp.square(x_nchw - mean), axis=(0, 2, 3), keepdims=True)
    xn = (x_nchw - mean) / jnp.sqrt(var + eps)
    xn = xn * gamma[None, :, None, None] + beta[None, :, None, None]
    xr = jnp.maximum(xn, 0.0)
    return jnp.einsum("nchw,oc->nohw", xr,
                      conv_weight.reshape(conv_weight.shape[0], -1))


if __name__ == "__main__":
    key = jax.random.PRNGKey(0)
    k_x, k_g, k_b, k_w = jax.random.split(key, 4)

    N, C, H, W = 2, 4, 16, 16
    OUT_C = 8

    x = jax.random.normal(k_x, (N, C, H, W), dtype=jnp.float32)
    gamma = 1.0 + 0.1 * jax.random.normal(k_g, (C,), dtype=jnp.float32)
    beta = 0.1 * jax.random.normal(k_b, (C,), dtype=jnp.float32)
    # Conv2d(C, OUT_C, kernel_size=1, bias=False) weight: (OUT_C, C, 1, 1)
    conv_w = jax.random.normal(k_w, (OUT_C, C, 1, 1), dtype=jnp.float32) * (1.0 / (C ** 0.5))

    out = transition_forward(x, gamma, beta, conv_w)
    jax.block_until_ready(out)

    ref = _reference(x, gamma, beta, conv_w)
    assert out.shape == (N, OUT_C, H, W), out.shape
    assert jnp.allclose(out, ref, atol=1e-4, rtol=1e-4), float(jnp.max(jnp.abs(out - ref)))

    print("KERNEL_OK")
</pallas_src>

<mosaic_0001>
module attributes {stable_mosaic.version = 11 : i64} {
  func.func @_transition_kernel(%arg0: i32, %arg1: i32, %arg2: memref<1x4x256xf32, #tpu.memory_space<vmem>>, %arg3: memref<4x1xf32, #tpu.memory_space<vmem>>, %arg4: memref<4x1xf32, #tpu.memory_space<vmem>>, %arg5: memref<8x4xf32, #tpu.memory_space<vmem>>, %arg6: memref<1x8x256xf32, #tpu.memory_space<vmem>>) attributes {dimension_semantics = [#tpu.dimension_semantics<parallel>, #tpu.dimension_semantics<parallel>], iteration_bounds = array<i64: 2, 1>, scalar_prefetch = 0 : i64, scratch_operands = 0 : i64, tpu.core_type = #tpu.core_type<tc>, window_params = [{transform_indices = @transform_0, window_bounds = array<i64: 1, 4, 256>}, {pipeline_mode = #tpu.pipeline_mode<synchronous>, transform_indices = @transform_1, window_bounds = array<i64: 4, 1>}, {pipeline_mode = #tpu.pipeline_mode<synchronous>, transform_indices = @transform_2, window_bounds = array<i64: 4, 1>}, {pipeline_mode = #tpu.pipeline_mode<synchronous>, transform_indices = @transform_3, window_bounds = array<i64: 8, 4>}, {transform_indices = @transform_4, window_bounds = array<i64: 1, 8, 256>}]} {
    %c0 = arith.constant 0 : index
    %c0_0 = arith.constant 0 : index
    %c0_1 = arith.constant 0 : index
    %0 = vector.load %arg2[%c0, %c0_0, %c0_1] : memref<1x4x256xf32, #tpu.memory_space<vmem>>, vector<1x4x256xf32>
    %1 = vector.shape_cast %0 : vector<1x4x256xf32> to vector<4x256xf32>
    %c0_2 = arith.constant 0 : index
    %c0_3 = arith.constant 0 : index
    %2 = vector.load %arg3[%c0_2, %c0_3] : memref<4x1xf32, #tpu.memory_space<vmem>>, vector<4x1xf32>
    %3 = vector.broadcast %2 : vector<4x1xf32> to vector<4x256xf32>
    %4 = arith.mulf %1, %3 : vector<4x256xf32>
    %c0_4 = arith.constant 0 : index
    %c0_5 = arith.constant 0 : index
    %5 = vector.load %arg4[%c0_4, %c0_5] : memref<4x1xf32, #tpu.memory_space<vmem>>, vector<4x1xf32>
    %6 = vector.broadcast %5 : vector<4x1xf32> to vector<4x256xf32>
    %7 = arith.addf %4, %6 : vector<4x256xf32>
    %cst = arith.constant 0.000000e+00 : f32
    %8 = vector.broadcast %cst : f32 to vector<4x256xf32>
    %9 = arith.maximumf %7, %8 : vector<4x256xf32>
    %c0_6 = arith.constant 0 : index
    %c0_7 = arith.constant 0 : index
    %10 = vector.load %arg5[%c0_6, %c0_7] : memref<8x4xf32, #tpu.memory_space<vmem>>, vector<8x4xf32>
    %cst_8 = arith.constant dense<0.000000e+00> : vector<8x256xf32>
    %11 = tpu.matmul %10, %9, %cst_8 {dimension_numbers = #tpu.dot_dimension_numbers<[1], [0], [0], [1], [0, 0, 1, 1], [], []>} : vector<8x4xf32>, vector<4x256xf32>, vector<8x256xf32> -> vector<8x256xf32>
    %c0_9 = arith.constant 0 : index
    %c0_10 = arith.constant 0 : index
    %c0_11 = arith.constant 0 : index
    %12 = vector.load %arg6[%c0_9, %c0_10, %c0_11] : memref<1x8x256xf32, #tpu.memory_space<vmem>>, vector<1x8x256xf32>
    %13 = vector.shape_cast %12 : vector<1x8x256xf32> to vector<8x256xf32>
    %14 = vector.shape_cast %11 : vector<8x256xf32> to vector<1x8x256xf32>
    tpu.vector_store %arg6[%c0_9, %c0_10, %c0_11], %14 {strides = array<i32>} : memref<1x8x256xf32, #tpu.memory_space<vmem>>, vector<1x8x256xf32>,
    return
  }
  func.func @transform_0(%arg0: i32, %arg1: i32) -> (i32, i32, i32) {
    %c0_i32 = arith.constant 0 : i32
    %c0_i32_0 = arith.constant 0 : i32
    return %arg0, %c0_i32, %arg1 : i32, i32, i32
  }
  func.func @transform_1(%arg0: i32, %arg1: i32) -> (i32, i32) {
    %c0_i32 = arith.constant 0 : i32
    %c0_i32_0 = arith.constant 0 : i32
    %c0_i32_1 = arith.constant 0 : i32
    return %c0_i32, %c0_i32_0 : i32, i32
  }
  func.func @transform_2(%arg0: i32, %arg1: i32) -> (i32, i32) {
    %c0_i32 = arith.constant 0 : i32
    %c0_i32_0 = arith.constant 0 : i32
    %c0_i32_1 = arith.constant 0 : i32
    return %c0_i32, %c0_i32_0 : i32, i32
  }
  func.func @transform_3(%arg0: i32, %arg1: i32) -> (i32, i32) {
    %c0_i32 = arith.constant 0 : i32
    %c0_i32_0 = arith.constant 0 : i32
    %c0_i32_1 = arith.constant 0 : i32
    return %c0_i32, %c0_i32_0 : i32, i32
  }
  func.func @transform_4(%arg0: i32, %arg1: i32) -> (i32, i32, i32) {
    %c0_i32 = arith.constant 0 : i32
    %c0_i32_0 = arith.constant 0 : i32
    return %arg0, %c0_i32, %arg1 : i32, i32, i32
  }
}

</mosaic_0001>

<llo_original>
// kernel: transition_forward.1
$region0: #{transition_forward.1}
  #allocation0 [shape = 'u32[]', space=smem, size = 0x4, offset = 0x4, fixed_abs, tag = 'smem constant byte address 0x4 - core index']
  #allocation1 [shape = 'u32[144,128]{1,0:T(1,128)}', space=vmem, size = 0x12000, scoped, tag = 'internal scratch']
  %s0 = inlined_call_operand.vmem [shape: f32[2,4,256], index: 0, kind: input, shape index: {}]
  %s1 = inlined_call_operand.vmem [shape: f32[4,1], index: 1, kind: input, shape index: {}]
  %s2 = inlined_call_operand.vmem [shape: f32[4,1], index: 2, kind: input, shape index: {}]
  %s3 = inlined_call_operand.vmem [shape: f32[8,4], index: 3, kind: input, shape index: {}]
  %s4 = inlined_call_operand.vmem [shape: f32[2,8,256], index: 4, kind: output, shape index: {}]
  %s5 = sld [smem:[#allocation0]]
  $region49: #{transition_forward.1} parent=0
    _
  %s7 = ssub.s32 1, %s5
  %s8 = scalar_select 0, %s7, %s5
  loop: start=0, step=1, limit=4
  $region2: #{transition_forward.1} parent=0 // loop_pre_header
    _
  $region3: #{transition_forward.1} parent=0 // loop_header
    %s10 = sphi 0, %s14
    %p11 = scmp.ge.s32.totalorder %s10, 4
    %s17 = sphi 0, %s29
    %s18 = sphi 0, %s25
    %s19 = sphi 0, %s17
    %s20 = sphi 0, %s18
    %s21 = sphi 0, %s19
    %s22 = sphi 0, %s20
    %s34 = sphi 0, %s36
    %s37 = sphi 0, %s34
    %s38 = sphi 0, %s37
    %s54 = sphi 0, %s38
    %s58 = sphi 0, %s58
    %s60 = sphi 0, %s58
    %s61 = sphi 0, %s60
    %s75 = sphi 0, %s61
    %s79 = sphi 0, %s79
    %s81 = sphi 0, %s79
    %s82 = sphi 0, %s81
    %s96 = sphi 0, %s82
    %s100 = sphi 0, %s100
    %s102 = sphi 0, %s100
    %s103 = sphi 0, %s102
    %s117 = sphi 0, %s103
    %s125 = sphi 0, %s127
    %s128 = sphi 0, %s125
    %s129 = sphi 0, %s128
    %s145 = sphi 0, %s129
  $region4: #{transition_forward.1} parent=0 // loop_header_branch
    %13 = sbr.rel (%p11) target = $region8
  $region5: #{transition_forward.1} parent=0 // loop_body
    %s15 = ssub.s32 %s10, 1
    %s16 = ssub.s32 %s10, 2
    %s23 = sadd.s32 1, %s18
    %p24 = scmp.ge.s32.totalorder %s23, 1
    %s25 = scalar_select %p24, 0, %s23
    %s26 = sadd.s32 1, %s17
    %s27 = scalar_select %p24, %s26, %s17
    %p28 = scmp.ge.s32.totalorder %s27, 2
    %s29 = scalar_select %p28, 0, %s27
    %s30 = ssub.s32 %s17, %s29
    %s31 = ssub.s32 %s18, %s25
    %s32 = sor.u32 %s30, %s31
    %p33 = scmp.eq.s32.totalorder %s32, 0
    %s35 = sadd.s32 %s34, 1
    %s36 = scalar_select %p33, %s34, %s35
    %p39 = pneg %p33
    %p40 = scmp.eq.s32.totalorder %s10, 1
    %p41 = por %p39, %p40
    %p42 = scmp.ne.s32.totalorder %s34, %s37
    %p43 = scmp.eq.s32.totalorder %s10, 0
    %p44 = por %p42, %p43
    %p45 = scmp.ne.s32.totalorder %s34, %s37
    %p46 = scmp.eq.s32.totalorder %s15, 1
    %p47 = por %p45, %p46
    %p48 = scmp.ne.s32.totalorder %s37, %s38
    %p49 = scmp.eq.s32.totalorder %s15, 0
    %p50 = por %p48, %p49
    %p51 = scmp.ne.s32.totalorder %s37, %s38
    %p52 = scmp.eq.s32.totalorder %s16, 1
    %p53 = por %p51, %p52
    %p55 = scmp.ne.s32.totalorder %s38, %s54
    %p56 = scmp.eq.s32.totalorder %s16, 0
    %p57 = por %p55, %p56
    %s59 = sadd.s32 %s58, 1
    %p62 = scmp.eq.s32.totalorder %s10, 1
    %p63 = scmp.ne.s32.totalorder %s58, %s60
    %p64 = scmp.eq.s32.totalorder %s10, 0
    %p65 = por %p63, %p64
    %p66 = scmp.ne.s32.totalorder %s58, %s60
    %p67 = scmp.eq.s32.totalorder %s15, 1
    %p68 = por %p66, %p67
    %p69 = scmp.ne.s32.totalorder %s60, %s61
    %p70 = scmp.eq.s32.totalorder %s15, 0
    %p71 = por %p69, %p70
    %p72 = scmp.ne.s32.totalorder %s60, %s61
    %p73 = scmp.eq.s32.totalorder %s16, 1
    %p74 = por %p72, %p73
    %p76 = scmp.ne.s32.totalorder %s61, %s75
    %p77 = scmp.eq.s32.totalorder %s16, 0
    %p78 = por %p76, %p77
    %s80 = sadd.s32 %s79, 1
    %p83 = scmp.eq.s32.totalorder %s10, 1
    %p84 = scmp.ne.s32.totalorder %s79, %s81
    %p85 = scmp.eq.s32.totalorder %s10, 0
    %p86 = por %p84, %p85
    %p87 = scmp.ne.s32.totalorder %s79, %s81
    %p88 = scmp.eq.s32.totalorder %s15, 1
    %p89 = por %p87, %p88
    %p90 = scmp.ne.s32.totalorder %s81, %s82
    %p91 = scmp.eq.s32.totalorder %s15, 0
    %p92 = por %p90, %p91
    %p93 = scmp.ne.s32.totalorder %s81, %s82
    %p94 = scmp.eq.s32.totalorder %s16, 1
    %p95 = por %p93, %p94
    %p97 = scmp.ne.s32.totalorder %s82, %s96
    %p98 = scmp.eq.s32.totalorder %s16, 0
    %p99 = por %p97, %p98
    %s101 = sadd.s32 %s100, 1
    %p104 = scmp.eq.s32.totalorder %s10, 1
    %p105 = scmp.ne.s32.totalorder %s100, %s102
    %p106 = scmp.eq.s32.totalorder %s10, 0
    %p107 = por %p105, %p106
    %p108 = scmp.ne.s32.totalorder %s100, %s102
    %p109 = scmp.eq.s32.totalorder %s15, 1
    %p110 = por %p108, %p109
    %p111 = scmp.ne.s32.totalorder %s102, %s103
    %p112 = scmp.eq.s32.totalorder %s15, 0
    %p113 = por %p111, %p112
    %p114 = scmp.ne.s32.totalorder %s102, %s103
    %p115 = scmp.eq.s32.totalorder %s16, 1
    %p116 = por %p114, %p115
    %p118 = scmp.ne.s32.totalorder %s103, %s117
    %p119 = scmp.eq.s32.totalorder %s16, 0
    %p120 = por %p118, %p119
    %s121 = ssub.s32 %s17, %s29
    %s122 = ssub.s32 %s18, %s25
    %s123 = sor.u32 %s121, %s122
    %p124 = scmp.eq.s32.totalorder %s123, 0
    %s126 = sadd.s32 %s125, 1
    %s127 = scalar_select %p124, %s125, %s126
    %p130 = pneg %p124
    %p131 = scmp.eq.s32.totalorder %s10, 1
    %p132 = por %p130, %p131
    %p133 = scmp.ne.s32.totalorder %s125, %s128
    %p134 = scmp.eq.s32.totalorder %s10, 0
    %p135 = por %p133, %p134
    %p136 = scmp.ne.s32.totalorder %s125, %s128
    %p137 = scmp.eq.s32.totalorder %s15, 1
    %p138 = por %p136, %p137
    %p139 = scmp.ne.s32.totalorder %s128, %s129
    %p140 = scmp.eq.s32.totalorder %s15, 0
    %p141 = por %p139, %p140
    %p142 = scmp.ne.s32.totalorder %s128, %s129
    %p143 = scmp.eq.s32.totalorder %s16, 1
    %p144 = por %p142, %p143
    %p146 = scmp.ne.s32.totalorder %s129, %s145
    %p147 = scmp.eq.s32.totalorder %s16, 0
    %p148 = por %p146, %p147
    %p149 = scmp.le.s32.totalorder 1, %s10
    %p150 = scmp.lt.s32.totalorder %s10, 3
    %p151 = pnand %p149, %p150
    %p152 = pneg %p151
    // Predicated region
    $region9: #{transition_forward.1} parent=5 // pred_check
      _
    $region10: #{transition_forward.1} parent=5 // pred_check_branch
      %154 = sbr.rel (%p151) target = $region12
    $region11: #{transition_forward.1} parent=5 // pred_region
      %s155 = ssub.s32 %s10, 1
      // Predicated region
      $region13: #{transition_forward.1} parent=11 // pred_check
        %p156 = pneg %p71
      $region14: #{transition_forward.1} parent=11 // pred_check_branch
        %158 = sbr.rel (%p156) target = $region16
      $region15: #{transition_forward.1} parent=11 // pred_region
        _
      $region16: #{transition_forward.1} parent=11 // pred_fallthru
        _
      // Predicated region
      $region17: #{transition_forward.1} parent=11 // pred_check
        %p159 = pneg %p92
      $region18: #{transition_forward.1} parent=11 // pred_check_branch
        %161 = sbr.rel (%p159) target = $region20
      $region19: #{transition_forward.1} parent=11 // pred_region
        _
      $region20: #{transition_forward.1} parent=11 // pred_fallthru
        _
      // Predicated region
      $region21: #{transition_forward.1} parent=11 // pred_check
        %p162 = pneg %p113
      $region22: #{transition_forward.1} parent=11 // pred_check_branch
        %164 = sbr.rel (%p162) target = $region24
      $region23: #{transition_forward.1} parent=11 // pred_region
        _
      $region24: #{transition_forward.1} parent=11 // pred_fallthru
        _
    $region12: #{transition_forward.1} parent=5 // pred_fallthru
      _
    %p165 = scmp.lt.s32.totalorder %s10, 2
    // Predicated region
    $region25: #{transition_forward.1} parent=5 // pred_check
      %p166 = pneg %p165
    $region26: #{transition_forward.1} parent=5 // pred_check_branch
      %168 = sbr.rel (%p166) target = $region28
    $region27: #{transition_forward.1} parent=5 // pred_region
      // Predicated region
      $region29: #{transition_forward.1} parent=27 // pred_check
        %p169 = pneg %p44
      $region30: #{transition_forward.1} parent=27 // pred_check_branch
        %171 = sbr.rel (%p169) target = $region32
      $region31: #{transition_forward.1} parent=27 // pred_region
        %s172 = smul.u32 2, %s18
        %p173 = scmp.lt.s32.totalorder %s17, 1
        %s174 = scalar_select %p173, %s17, 1
        %p175 = scmp.lt.s32.totalorder %s172, 1
        %s176 = scalar_select %p175, %s172, 1
        %s177 = smul.addr %s174, 2
        %s178 = sadd.s32 %s176, %s177
        %s179 = smul.addr %s178, 4
        %s180 = scalar_lea.vmem %s0, %s179
        %s181 = smul.u32 2, %s18
      $region32: #{transition_forward.1} parent=27 // pred_fallthru
        _
    $region28: #{transition_forward.1} parent=5 // pred_fallthru
      _
    %p182 = scmp.le.s32.totalorder 1, %s10
    %p183 = scmp.lt.s32.totalorder %s10, 3
    %p184 = pnand %p182, %p183
    %p185 = pneg %p184
    // Predicated region
    $region33: #{transition_forward.1} parent=5 // pred_check
      _
    $region34: #{transition_forward.1} parent=5 // pred_check_branch
      %187 = sbr.rel (%p184) target = $region36
    $region35: #{transition_forward.1} parent=5 // pred_region
      %s188 = ssub.s32 %s10, 1
      %s189 = smul.u32 2, %s20
      %p190 = scmp.lt.s32.totalorder %s19, 1
      %s191 = scalar_select %p190, %s19, 1
      %p192 = scmp.lt.s32.totalorder %s189, 1
      %s193 = scalar_select %p192, %s189, 1
      %s194 = smul.addr %s191, 2
      %s195 = sadd.s32 %s193, %s194
      %s196 = smul.addr %s195, 4
      %s197 = scalar_lea.vmem %s0, %s196
      %p198 = pneg %p50
      %p199 = pneg %p47
      %p200 = pneg %p71
      %p201 = pneg %p68
      %p202 = pneg %p92
      %p203 = pneg %p89
      %p204 = pneg %p113
      %p205 = pneg %p110
      %p206 = pneg %p141
      %p207 = pneg %p138
      %s208 = smul.u32 2, %s20
      %p209 = scmp.lt.s32.totalorder %s19, 1
      %s210 = scalar_select %p209, %s19, 1
      %p211 = scmp.lt.s32.totalorder %s208, 1
      %s212 = scalar_select %p211, %s208, 1
      %s213 = smul.addr %s210, 2
      %s214 = sadd.s32 %s212, %s213
      %s215 = smul.addr %s214, 8
      %s216 = scalar_lea.vmem %s4, %s215
      %s217 = smul.u32 2, %s20
      %p218 = scmp.lt.s32.totalorder %s19, 1
      %s219 = scalar_select %p218, %s19, 1
      %p220 = scmp.lt.s32.totalorder %s217, 1
      %s221 = scalar_select %p220, %s217, 1
      %s222 = smul.addr %s219, 2
      %s223 = sadd.s32 %s221, %s222
      %s224 = smul.addr %s223, 4
      %s225 = scalar_lea.vmem %s0, %s224
      %s226 = smul.u32 2, %s20
      %s227 = smul.u32 2, %s20
      %p228 = scmp.lt.s32.totalorder %s19, 1
      %s229 = scalar_select %p228, %s19, 1
      %p230 = scmp.lt.s32.totalorder %s227, 1
      %s231 = scalar_select %p230, %s227, 1
      %s232 = smul.addr %s229, 2
      %s233 = sadd.s32 %s231, %s232
      %s234 = smul.addr %s233, 8
      %s235 = scalar_lea.vmem %s4, %s234
      %s236 = smul.u32 2, %s20
      %v237 = vld [vmem:[%s225] sm:$0xff]
      %v238 = vld [vmem:[%s1] sm:$0xf]
      %240 = vset.pattern.permute.xlu0 0
      %241 = vperm.xlu0 %240, %v238
      %v242 = vpop.permute.xlu0 %241
      %v244 = vunpack.c.l.s4 839922192
      %v245 = vunpack.c.0.s8 %v244
      %v246 = vlaneseq
      %v247 = vshrl.u32 %v246, 7
      %v248 = vsub.s32 %v245, %v247
      %v249 = vrot.slane %v242, %v248
      %v251 = vmul.f32 %v237, %v249
      %v252 = vld [vmem:[%s2] sm:$0xf]
      %254 = vset.pattern.permute.xlu0 0
      %255 = vperm.xlu0 %254, %v252
      %v256 = vpop.permute.xlu0 %255
      %v258 = vunpack.c.l.s4 839922192
      %v259 = vunpack.c.0.s8 %v258
      %v260 = vlaneseq
      %v261 = vshrl.u32 %v260, 7
      %v262 = vsub.s32 %v259, %v261
      %v263 = vrot.slane %v256, %v262
      %v265 = vadd.f32 %v251, %v263
      %v266 = vmax.f32 %v265, 0.0
      %v267 = vld [vmem:[%s3] sm:$0xff]
      %v269 = vcombine.high %v266, %v266
      %vm270 = vcmask 31744
      %v272 = vsel %vm270, %v267, 0
      %vm274 = vcmask 1043456
      %v275 = vsel %vm274, %v266, 0
      %v277 = vsel %vm274, %v269, 0
      %279 = vmatprep.subr.mxu0 0.0
      %280 = vmatpush1.msra.mxu0 0.0
      %281 = vmatprep.subr.mxu0 0.0
      %282 = vmatpush1.msra.mxu0 0.0
      %283 = vmatprep.subr.mxu0 0.0
      %284 = vmatpush1.msra.mxu0 0.0
      %285 = vmatprep.subr.mxu0 0.0
      %286 = vmatpush1.msra.mxu0 0.0
      %287 = vmatprep.subr.mxu0 0.0
      %288 = vmatpush1.msra.mxu0 0.0
      %289 = vmatprep.subr.mxu0 0.0
      %290 = vmatpush1.msra.mxu0 0.0
      %291 = vmatprep.subr.mxu0 0.0
      %292 = vmatpush1.msra.mxu0 0.0
      %293 = vmatprep.subr.mxu0 0.0
      %294 = vmatpush1.msra.mxu0 0.0
      %295 = vmatprep.subr.mxu0 0.0
      %296 = vmatpush1.msra.mxu0 0.0
      %297 = vmatprep.subr.mxu0 0.0
      %298 = vmatpush1.msra.mxu0 0.0
      %299 = vmatprep.subr.mxu0 0.0
      %300 = vmatpush1.msra.mxu0 0.0
      %301 = vmatprep.subr.mxu0 0.0
      %302 = vmatpush1.msra.mxu0 0.0
      %303 = vmatprep.subr.mxu0 0.0
      %304 = vmatpush1.msra.mxu0 0.0
      %305 = vmatprep.subr.mxu0 0.0
      %306 = vmatpush1.msra.mxu0 0.0
      %307 = vmatprep.subr.mxu0 0.0
      %308 = vmatpush1.msra.mxu0 0.0
      %309 = vmatprep.subr.mxu0 %v277
      %310 = vmatpush1.msra.mxu0 %v275
      %311 = vmatprep.subr.mxu0 0.0
      %312 = vmatpush2.msra.mxu0 0.0
      %313 = vmatprep.subr.mxu0 0.0
      %314 = vmatpush2.msra.mxu0 0.0
      %315 = vmatprep.subr.mxu0 0.0
      %316 = vmatpush2.msra.mxu0 0.0
      %317 = vmatprep.subr.mxu0 0.0
      %318 = vmatpush2.msra.mxu0 0.0
      %319 = vmatprep.subr.mxu0 0.0
      %320 = vmatpush2.msra.mxu0 0.0
      %321 = vmatprep.subr.mxu0 0.0
      %322 = vmatpush2.msra.mxu0 0.0
      %323 = vmatprep.subr.mxu0 0.0
      %324 = vmatpush2.msra.mxu0 0.0
      %325 = vmatprep.subr.mxu0 0.0
      %326 = vmatpush2.msra.mxu0 0.0
      %327 = vmatprep.subr.mxu0 0.0
      %328 = vmatpush2.msra.mxu0 0.0
      %329 = vmatprep.subr.mxu0 0.0
      %330 = vmatpush2.msra.mxu0 0.0
      %331 = vmatprep.subr.mxu0 0.0
      %332 = vmatpush2.msra.mxu0 0.0
      %333 = vmatprep.subr.mxu0 0.0
      %334 = vmatpush2.msra.mxu0 0.0
      %335 = vmatprep.subr.mxu0 0.0
      %336 = vmatpush2.msra.mxu0 0.0
      %337 = vmatprep.subr.mxu0 0.0
      %338 = vmatpush2.msra.mxu0 0.0
      %339 = vmatprep.subr.mxu0 0.0
      %340 = vmatpush2.msra.mxu0 0.0
      %341 = vmatprep.subr.mxu0 0.0
      %342 = vmatpush2.msra.mxu0 0.0
      %343 = vmatprep.mubr.f32.mxu0 0.0
      %344 = vmatmul.mubr.f32.gmra.mxu0 %v272
      %v345 = vpop.f32.mrf.mxu0
      %v346 = vadd.f32 0.0, %v345
      %v347 = vpop.f32.mrf.mxu0
      %v348 = vadd.f32 0.0, %v347
      %349 = vdwg.mxu0
      %350 = vst [vmem:[%s235] sm:$0xff] %v346
      %351 = vst [vmem:[%s235 + $0x8] sm:$0xff] %v348
      %s352 = smul.u32 2, %s20
      %p353 = scmp.lt.s32.totalorder %s19, 1
      %s354 = scalar_select %p353, %s19, 1
      %p355 = scmp.lt.s32.totalorder %s352, 1
      %s356 = scalar_select %p355, %s352, 1
      %s357 = smul.addr %s354, 2
      %s358 = sadd.s32 %s356, %s357
      %s359 = smul.addr %s358, 8
      %s360 = scalar_lea.vmem %s4, %s359
      // Predicated region
      $region37: #{transition_forward.1} parent=35 // pred_check
        %p361 = pneg %p138
      $region38: #{transition_forward.1} parent=35 // pred_check_branch
        %363 = sbr.rel (%p361) target = $region40
      $region39: #{transition_forward.1} parent=35 // pred_region
        %s364 = smul.u32 2, %s20
      $region40: #{transition_forward.1} parent=35 // pred_fallthru
        _
    $region36: #{transition_forward.1} parent=5 // pred_fallthru
      _
    %p365 = scmp.le.s32.totalorder 2, %s10
    // Predicated region
    $region41: #{transition_forward.1} parent=5 // pred_check
      %p366 = pneg %p365
    $region42: #{transition_forward.1} parent=5 // pred_check_branch
      %368 = sbr.rel (%p366) target = $region44
    $region43: #{transition_forward.1} parent=5 // pred_region
      %s369 = ssub.s32 %s10, 2
      // Predicated region
      $region45: #{transition_forward.1} parent=43 // pred_check
        %p370 = pneg %p144
      $region46: #{transition_forward.1} parent=43 // pred_check_branch
        %372 = sbr.rel (%p370) target = $region48
      $region47: #{transition_forward.1} parent=43 // pred_region
        %s373 = smul.u32 2, %s22
        %p374 = scmp.lt.s32.totalorder %s21, 1
        %s375 = scalar_select %p374, %s21, 1
        %p376 = scmp.lt.s32.totalorder %s373, 1
        %s377 = scalar_select %p376, %s373, 1
        %s378 = smul.addr %s375, 2
        %s379 = sadd.s32 %s377, %s378
        %s380 = smul.addr %s379, 8
        %s381 = scalar_lea.vmem %s4, %s380
      $region48: #{transition_forward.1} parent=43 // pred_fallthru
        _
    $region44: #{transition_forward.1} parent=5 // pred_fallthru
      _
  $region6: #{transition_forward.1} parent=0 // loop_footer
    %s14 = sadd.s32 1, %s10
  $region7: #{transition_forward.1} parent=0 // loop_footer_branch
    %9 = sbr.rel target = $region3
  $region8: #{transition_forward.1} parent=0 // loop_exit
    _

</llo_original>
